<compile_context>
chip_gen: v6e
topology: v6e:2x2x1
jax: 0.10.0
libtpu: 0.0.40
codegen_flags: <defaults>
</compile_context>

<pallas_src>
import numpy as np
import jax
import jax.numpy as jnp
from jax.experimental import pallas as pl
from jax.experimental.pallas import tpu as pltpu


def af_forward_kernel(u_ref, logs_ref, t_ref, x_ref):
    # (1, D) params, broadcast over the batch (sublane) axis.
    scale = jnp.exp(logs_ref[...].astype(jnp.float32))      # EUP
    shift = t_ref[...].astype(jnp.float32)
    x = u_ref[...].astype(jnp.float32) * scale + shift       # VPU fused mul-add
    x_ref[...] = x.astype(x_ref.dtype)                       # single lane-dense store


def af_layer_forward(u, logs, t, *, block_rows=None):
    """u: (B, D), logs/t: (D,)  ->  (x: (B, D) same dtype as u, logd: (B,) f32)"""
    B, D = u.shape
    out_dtype = u.dtype

    # log-determinant does not depend on u: keep it out of the kernel.
    logd = jnp.broadcast_to(jnp.sum(logs.astype(jnp.float32)), (B,))

    logs2 = logs.reshape(1, D)
    t2 = t.reshape(1, D)

    # ---- pick a batch tile -------------------------------------------------
    itemsize = jnp.dtype(out_dtype).itemsize
    if block_rows is None:
        # ~2 MiB per tile buffer; with double-buffered in + out streams that is
        # <= ~8 MiB VMEM -> fits the scoped default on v5e/v6e/v7x.
        target_bytes = 2 * 1024 * 1024
        block_rows = max(8, min(1024, target_bytes // max(1, D * itemsize)))
    b_pad8 = ((B + 7) // 8) * 8
    block_rows = min(int(block_rows), b_pad8)
    block_rows = max(8, (block_rows // 8) * 8)

    # pad batch so every block is full (remainder handling for the (8,128) rule)
    Bp = ((B + block_rows - 1) // block_rows) * block_rows
    u_p = u if Bp == B else jnp.pad(u, ((0, Bp - B), (0, 0)))

    grid = (Bp // block_rows,)

    x_p = pl.pallas_call(
        af_forward_kernel,
        out_shape=jax.ShapeDtypeStruct((Bp, D), out_dtype),
        grid_spec=pl.GridSpec(
            grid=grid,
            in_specs=[
                pl.BlockSpec((block_rows, D), lambda i: (i, 0)),   # u tile
                pl.BlockSpec((1, D), lambda i: (0, 0)),            # logs (resident)
                pl.BlockSpec((1, D), lambda i: (0, 0)),            # t    (resident)
            ],
            out_specs=pl.BlockSpec((block_rows, D), lambda i: (i, 0)),
        ),
        compiler_params=pltpu.CompilerParams(
            dimension_semantics=("parallel",),   # megacore sharding on v7x
        ),
    )(u_p, logs2, t2)

    x = x_p if Bp == B else x_p[:B]
    return x, logd


def init_af_params(key, dim, slope=0.001):
    """Deterministic re-creation of AFLayer.__init__ parameter shapes."""
    k1, k2 = jax.random.split(key)
    un_s = jax.random.normal(k1, (dim,), dtype=jnp.float32)
    logs = un_s / (1.0 + jnp.abs(un_s / np.log(slope)))
    t = jax.random.normal(k2, (dim,), dtype=jnp.float32)
    return logs, t


def _reference(u, logs, t):
    x = u.astype(jnp.float32) * jnp.exp(logs)[None, :] + t[None, :]
    logd = jnp.broadcast_to(jnp.sum(logs), (u.shape[0],))
    return x, logd


if __name__ == "__main__":
    key = jax.random.PRNGKey(0)
    k_param, k_input = jax.random.split(key)

    # small shapes consistent with the module: batch=8, hidden dim=32
    B, D = 8, 32
    logs, t = init_af_params(k_param, D, slope=0.001)
    u = jax.random.normal(k_input, (B, D), dtype=jnp.float32)

    x, logd = af_layer_forward(u, logs, t)
    jax.block_until_ready((x, logd))

    x_ref, logd_ref = _reference(u, logs, t)
    np.testing.assert_allclose(np.asarray(x), np.asarray(x_ref), rtol=1e-5, atol=1e-5)
    np.testing.assert_allclose(np.asarray(logd), np.asarray(logd_ref), rtol=1e-5, atol=1e-5)

    # exercise multi-tile + ragged-batch padding path (B=20, explicit 8-row tiles)
    B2 = 20
    u2 = jax.random.normal(jax.random.PRNGKey(1), (B2, D), dtype=jnp.float32)
    x2, logd2 = af_layer_forward(u2, logs, t, block_rows=8)
    jax.block_until_ready((x2, logd2))
    x2_ref, logd2_ref = _reference(u2, logs, t)
    np.testing.assert_allclose(np.asarray(x2), np.asarray(x2_ref), rtol=1e-5, atol=1e-5)
    np.testing.assert_allclose(np.asarray(logd2), np.asarray(logd2_ref), rtol=1e-5, atol=1e-5)

    # bf16 I/O path (math stays f32 in-register inside the kernel)
    u3 = u.astype(jnp.bfloat16)
    x3, logd3 = af_layer_forward(u3, logs, t)
    jax.block_until_ready((x3, logd3))
    np.testing.assert_allclose(np.asarray(x3, dtype=np.float32), np.asarray(x_ref),
                               rtol=2e-2, atol=2e-2)

    print("KERNEL_OK")
</pallas_src>

<mosaic_0001>
module attributes {stable_mosaic.version = 11 : i64} {
  func.func @af_forward_kernel(%arg0: i32, %arg1: memref<8x32xf32, #tpu.memory_space<vmem>>, %arg2: memref<1x32xf32, #tpu.memory_space<vmem>>, %arg3: memref<1x32xf32, #tpu.memory_space<vmem>>, %arg4: memref<8x32xf32, #tpu.memory_space<vmem>>) attributes {dimension_semantics = [#tpu.dimension_semantics<parallel>], iteration_bounds = array<i64: 1>, scalar_prefetch = 0 : i64, scratch_operands = 0 : i64, tpu.core_type = #tpu.core_type<tc>, window_params = [{transform_indices = @transform_0, window_bounds = array<i64: 8, 32>}, {pipeline_mode = #tpu.pipeline_mode<synchronous>, transform_indices = @transform_1, window_bounds = array<i64: 1, 32>}, {pipeline_mode = #tpu.pipeline_mode<synchronous>, transform_indices = @transform_2, window_bounds = array<i64: 1, 32>}, {transform_indices = @transform_3, window_bounds = array<i64: 8, 32>}]} {
    %c0 = arith.constant 0 : index
    %c0_0 = arith.constant 0 : index
    %0 = vector.load %arg2[%c0, %c0_0] : memref<1x32xf32, #tpu.memory_space<vmem>>, vector<1x32xf32>
    %1 = math.exp %0 : vector<1x32xf32>
    %c0_1 = arith.constant 0 : index
    %c0_2 = arith.constant 0 : index
    %2 = vector.load %arg3[%c0_1, %c0_2] : memref<1x32xf32, #tpu.memory_space<vmem>>, vector<1x32xf32>
    %c0_3 = arith.constant 0 : index
    %c0_4 = arith.constant 0 : index
    %3 = vector.load %arg1[%c0_3, %c0_4] : memref<8x32xf32, #tpu.memory_space<vmem>>, vector<8x32xf32>
    %4 = vector.broadcast %1 : vector<1x32xf32> to vector<8x32xf32>
    %5 = arith.mulf %3, %4 : vector<8x32xf32>
    %6 = vector.broadcast %2 : vector<1x32xf32> to vector<8x32xf32>
    %7 = arith.addf %5, %6 : vector<8x32xf32>
    %c0_5 = arith.constant 0 : index
    %c0_6 = arith.constant 0 : index
    %8 = vector.load %arg4[%c0_5, %c0_6] : memref<8x32xf32, #tpu.memory_space<vmem>>, vector<8x32xf32>
    tpu.vector_store %arg4[%c0_5, %c0_6], %7 {strides = array<i32>} : memref<8x32xf32, #tpu.memory_space<vmem>>, vector<8x32xf32>,
    return
  }
  func.func @transform_0(%arg0: i32) -> (i32, i32) {
    %c0_i32 = arith.constant 0 : i32
    %c0_i32_0 = arith.constant 0 : i32
    return %arg0, %c0_i32 : i32, i32
  }
  func.func @transform_1(%arg0: i32) -> (i32, i32) {
    %c0_i32 = arith.constant 0 : i32
    %c0_i32_0 = arith.constant 0 : i32
    %c0_i32_1 = arith.constant 0 : i32
    return %c0_i32, %c0_i32_0 : i32, i32
  }
  func.func @transform_2(%arg0: i32) -> (i32, i32) {
    %c0_i32 = arith.constant 0 : i32
    %c0_i32_0 = arith.constant 0 : i32
    %c0_i32_1 = arith.constant 0 : i32
    return %c0_i32, %c0_i32_0 : i32, i32
  }
  func.func @transform_3(%arg0: i32) -> (i32, i32) {
    %c0_i32 = arith.constant 0 : i32
    %c0_i32_0 = arith.constant 0 : i32
    return %arg0, %c0_i32 : i32, i32
  }
}

</mosaic_0001>

<llo_original>
// kernel: tpu_custom_call.1
$region0: #{tpu_custom_call.1}
  #allocation0 [shape = 'u32[]', space=smem, size = 0x4, offset = 0x4, fixed_abs, tag = 'smem constant byte address 0x4 - core index']
  #allocation1 [shape = 'u32[144,128]{1,0:T(1,128)}', space=vmem, size = 0x12000, scoped, tag = 'internal scratch']
  %s0 = inlined_call_operand.hbm [shape: f32[8,32], index: 0, kind: input, shape index: {}]
  %s1 = inlined_call_operand.vmem [shape: f32[1,32], index: 1, kind: input, shape index: {}]
  %s2 = inlined_call_operand.vmem [shape: f32[1,32], index: 2, kind: input, shape index: {}]
  %s3 = inlined_call_operand.hbm [shape: f32[8,32], index: 3, kind: output, shape index: {}]
  %s4 = sld [smem:[#allocation0]]
  $region26: #{tpu_custom_call.1} parent=0
    _
  %s6 = ssub.s32 1, %s4
  %s7 = scalar_select 0, %s6, %s4
  $region1: #{tpu_custom_call.1} parent=0
    #allocation2 [shape = 'u8[4096]{0}', space=vmem, size = 0x1000, scoped, tag = 'input window, operand 0, single buffered']
    #allocation3 [shape = 's32[1]{0}', space=sflag, size = 0x4, scoped, tag = 'scoped memory for tpu_custom_call.1']
    #allocation4 [shape = 's32[1]{0}', space=sflag, size = 0x4, scoped, tag = 'scoped memory for tpu_custom_call.1']
    #allocation5 [shape = 'u8[4096]{0}', space=vmem, size = 0x1000, scoped, tag = 'output window, operand 0, single buffered']
    %8 = vsyncpa [#allocation3], 0
    %9 = vsyncpa [#allocation4], 0
    // Predicated region
    $region2: #{tpu_custom_call.1} parent=1 // pred_check
      _
    $region3: #{tpu_custom_call.1} parent=1 // pred_check_branch
      %11 = sbr.rel (0) target = $region5
    $region4: #{tpu_custom_call.1} parent=1 // pred_region
      %s13 = ssub.s32 128, 128
      %14 = vsyncadd [#allocation3], %s13
      %s16 = sshll.u32 [#allocation2], 4
      %s17 = int_to_ptr.vmem [resolvable:$true] %s16
      %19 = dma.hbm_to_vmem [thread:$0]  %s0, 128, %s17, [#allocation3]
    $region5: #{tpu_custom_call.1} parent=1 // pred_fallthru
      _
    // Predicated region
    $region6: #{tpu_custom_call.1} parent=1 // pred_check
      _
    $region7: #{tpu_custom_call.1} parent=1 // pred_check_branch
      %21 = sbr.rel (0) target = $region9
    $region8: #{tpu_custom_call.1} parent=1 // pred_region
      _
    $region9: #{tpu_custom_call.1} parent=1 // pred_fallthru
      _
    // Predicated region
    $region10: #{tpu_custom_call.1} parent=1 // pred_check
      _
    $region11: #{tpu_custom_call.1} parent=1 // pred_check_branch
      %23 = sbr.rel (0) target = $region13
    $region12: #{tpu_custom_call.1} parent=1 // pred_region
      _
    $region13: #{tpu_custom_call.1} parent=1 // pred_fallthru
      _
    // Predicated region
    $region14: #{tpu_custom_call.1} parent=1 // pred_check
      _
    $region15: #{tpu_custom_call.1} parent=1 // pred_check_branch
      %25 = sbr.rel (0) target = $region17
    $region16: #{tpu_custom_call.1} parent=1 // pred_region
      %26 = dma.done [#allocation3], 128
    $region17: #{tpu_custom_call.1} parent=1 // pred_fallthru
      _
    %v27 = vld [vmem:[%s1] sm:$0x1]
    %v28 = vmul.f32 %v27, 1.442695
    %v29 = vpow.pop %v28
    %v30 = vld [vmem:[%s2] sm:$0x1]
    %v31 = vld [vmem:[#allocation2] sm:$0xff]
    %v33 = vlaneseq
    %v34 = vshrl.u32 %v33, 7
    %v35 = vsub.s32 0, %v34
    %v36 = vrot.slane %v29, %v35
    %v38 = vmul.f32 %v31, %v36
    %v40 = vlaneseq
    %v41 = vshrl.u32 %v40, 7
    %v42 = vsub.s32 0, %v41
    %v43 = vrot.slane %v30, %v42
    %v45 = vadd.f32 %v38, %v43
    %vm46 = vcmask 261120
    %47 = vst.msk [vmem:[#allocation5] sm:$0xff] %vm46, %v45
    // Predicated region
    $region18: #{tpu_custom_call.1} parent=1 // pred_check
      _
    $region19: #{tpu_custom_call.1} parent=1 // pred_check_branch
      %49 = sbr.rel (0) target = $region21
    $region20: #{tpu_custom_call.1} parent=1 // pred_region
      %s51 = ssub.s32 128, 128
      %52 = vsyncadd [#allocation4], %s51
      %s54 = sshll.u32 [#allocation5], 4
      %s55 = int_to_ptr.vmem [resolvable:$true] %s54
      %57 = dma.vmem_to_hbm [thread:$0]  %s55, 128, %s3, [#allocation4]
    $region21: #{tpu_custom_call.1} parent=1 // pred_fallthru
      _
    // Predicated region
    $region22: #{tpu_custom_call.1} parent=1 // pred_check
      _
    $region23: #{tpu_custom_call.1} parent=1 // pred_check_branch
      %59 = sbr.rel (0) target = $region25
    $region24: #{tpu_custom_call.1} parent=1 // pred_region
      %60 = dma.done [#allocation4], 128
    $region25: #{tpu_custom_call.1} parent=1 // pred_fallthru
      _
    %61 = vsyncpa [#allocation3], 1
    %62 = vsyncpa [#allocation4], 1

</llo_original>
